<compile_context>
chip_gen: v7x
topology: tpu7x:2x2x1
jax: 0.10.0
libtpu: 0.0.40
codegen_flags: <defaults>
</compile_context>

<pallas_src>
import functools

import jax
import jax.numpy as jnp
from jax.experimental import pallas as pl
from jax.experimental.pallas import tpu as pltpu

EPS = 1e-5  # nn.InstanceNorm2d default: affine=False, biased variance, eps=1e-5


def _round_up(x, m):
    return (x + m - 1) // m * m


def _divisor_tile(n, mult, cap):
    """Largest divisor of `n` that is a multiple of `mult` and <= cap.

    Falls back to the smallest multiple-of-`mult` divisor if none fit the cap."""
    cands = [d for d in range(1, n + 1) if n % d == 0 and d % mult == 0]
    fitting = [d for d in cands if d <= cap]
    return max(fitting) if fitting else min(cands)


def upsampling_add_kernel(x_ref, w_ref, col_ref, out_ref, acc_ref, *, H, W):
    """One (batch, Cout-tile, Cin-tile) grid step.

    x_ref:   (1, cin_tile, H*W)     input features, spatial flattened onto lanes
    w_ref:   (1, co_tile, cin_tile) 1x1 conv weight tile (no bias)
    col_ref: (1, H*W)               int32 column index j of every flattened pixel
    out_ref: (1, 4, co_tile, H*W)   normalized upsampled conv, phase-blocked:
                                    phase p*2+q holds output pixels (2i+p, 2j+q)
    acc_ref: (co_tile, H*W) f32     conv accumulator across the Cin-tile grid axis
    """
    HW = H * W
    k = pl.program_id(2)

    @pl.when(k == 0)
    def _():
        acc_ref[...] = jnp.zeros_like(acc_ref)

    # Partial 1x1 conv for this Cin tile.  The conv commutes with the (linear)
    # bilinear upsample, so the MXU works on H*W pixels rather than 4*H*W.
    acc_ref[...] += jnp.dot(w_ref[0], x_ref[0], preferred_element_type=jnp.float32)

    @pl.when(k == pl.num_programs(2) - 1)
    def _():
        conv = acc_ref[...]                              # (co_tile, HW)

        # Boundary masks for edge-replicate clamping of the bilinear taps.
        flat = jax.lax.broadcasted_iota(jnp.int32, (1, HW), 1)
        col = col_ref[...]                               # (1, HW) == flat % W
        first_row = flat < W
        last_row = flat >= HW - W
        first_col = col == 0
        last_col = col == W - 1

        # Bilinear x2 (align_corners=False), decomposed into the 4 output phases:
        #   out row 2i   = 0.75*in[i] + 0.25*in[i-1]   (clamped at i=0)
        #   out row 2i+1 = 0.75*in[i] + 0.25*in[i+1]   (clamped at i=H-1)
        # Row shifts are lane rolls by W of the flattened grid; wrapped lanes are
        # fixed up by the boundary masks (edge replicate).  Columns are rolls by 1.
        prev_r = jnp.where(first_row, conv, pltpu.roll(conv, W, axis=1))
        next_r = jnp.where(last_row, conv, pltpu.roll(conv, HW - W, axis=1))
        r0 = 0.75 * conv + 0.25 * prev_r                 # even output rows
        r1 = 0.75 * conv + 0.25 * next_r                 # odd output rows

        def col_mix(r):
            pc = jnp.where(first_col, r, pltpu.roll(r, 1, axis=1))       # col j-1
            nc = jnp.where(last_col, r, pltpu.roll(r, HW - 1, axis=1))   # col j+1
            return 0.75 * r + 0.25 * pc, 0.75 * r + 0.25 * nc

        s00, s01 = col_mix(r0)   # (even rows, even cols), (even rows, odd cols)
        s10, s11 = col_mix(r1)   # (odd rows,  even cols), (odd rows,  odd cols)

        # InstanceNorm2d (affine=False): per (batch, channel) stats over the joint
        # 2H x 2W extent, computed as E[s^2] - mean^2 -> only two lane reductions.
        inv_n = 1.0 / (4.0 * HW)
        ssum = (s00 + s01) + (s10 + s11)
        ssq = (s00 * s00 + s01 * s01) + (s10 * s10 + s11 * s11)
        mean = ssum.sum(axis=1, keepdims=True) * inv_n
        var = jnp.maximum(ssq.sum(axis=1, keepdims=True) * inv_n - mean * mean, 0.0)
        scale = jax.lax.rsqrt(var + EPS)                 # (co_tile, 1)
        shift = -mean * scale
        scale_b = jnp.broadcast_to(scale, conv.shape)    # hoisted broadcasts;
        shift_b = jnp.broadcast_to(shift, conv.shape)    # one FMA per phase below

        out_ref[0, 0] = s00 * scale_b + shift_b
        out_ref[0, 1] = s01 * scale_b + shift_b
        out_ref[0, 2] = s10 * scale_b + shift_b
        out_ref[0, 3] = s11 * scale_b + shift_b


@jax.jit
def upsampling_add(x_nchw, weight, skip_nchw):
    """x: (B, Cin, H, W); weight: (Cout, Cin) [1x1 conv, no bias]; skip: (B, Cout, 2H, 2W)."""
    B, Cin, H, W = x_nchw.shape
    Cout = weight.shape[0]
    HW = H * W
    assert skip_nchw.shape == (B, Cout, 2 * H, 2 * W)

    f32 = jnp.float32
    # Free (contiguous) reshape only -- no transpose / extra HBM pass over x.
    x_flat = x_nchw.astype(f32).reshape(B, Cin, HW)
    col_ids = jnp.tile(jnp.arange(W, dtype=jnp.int32), H).reshape(1, HW)

    # ---- shape-derived tiling -----------------------------------------------------
    # Cout rounded up to a multiple of 8: dense sublane tiles / unmasked stores.
    # Zero weight rows are inert under InstanceNorm (output exactly 0) and are
    # sliced off after the call.
    cout_pad = _round_up(Cout, 8)
    w = weight.astype(f32)
    if cout_pad != Cout:
        w = jnp.pad(w, ((0, cout_pad - Cout), (0, 0)))

    # Cin tiling (innermost "arbitrary" axis) bounds the double-buffered x block;
    # only multiple-of-8 divisors keep the BlockSpec sublane rule, else keep Cin whole.
    x_budget = 16 * 1024 * 1024
    if Cin % 8 == 0:
        cin_cap = max(8, x_budget // (2 * HW * 4))
        cin_tile = _divisor_tile(Cin, 8, cin_cap)
    else:
        cin_tile = Cin
    n_k = Cin // cin_tile

    # Cout tiling: exact (InstanceNorm stats are per (batch, channel)); bounds the
    # per-step output block + accumulator + live temporaries.
    co_budget = 16 * 1024 * 1024
    per_co_bytes = (2 * 4 + 1 + 12) * HW * 4   # dbl-buffered out + acc + ~12 temps
    co_cap = max(8, co_budget // per_co_bytes)
    co_tile = _divisor_tile(cout_pad, 8, co_cap)
    n_co = cout_pad // co_tile

    # Keep >= 2 grid steps where the shape allows (v7x megacore: 2 TensorCores).
    if B * n_co * n_k == 1 and co_tile % 16 == 0:
        co_tile //= 2
        n_co = cout_pad // co_tile

    # Weight laid out as (n_k, cout_pad, cin_tile) so each (co, k) tile is a dense,
    # constraint-satisfying block.  Weight is tiny; this rearrangement costs nothing.
    w_k = w.reshape(cout_pad, n_k, cin_tile).transpose(1, 0, 2)

    # VMEM limit derived from the actual working set, capped well below v7x's 64 MiB
    # physical per-TensorCore VMEM (the previous hardcoded 64 MiB left no headroom).
    est_bytes = (2 * cin_tile * HW                      # x (double-buffered)
                 + (2 * 4 + 1 + 12) * co_tile * HW      # out (dbl) + acc + temporaries
                 + 2 * co_tile * cin_tile               # w
                 + 2 * HW) * 4                          # col ids
    vmem_limit = int(min(56 * 1024 * 1024, max(32 * 1024 * 1024, 2 * est_bytes)))

    kernel = functools.partial(upsampling_add_kernel, H=H, W=W)
    out_ph = pl.pallas_call(
        kernel,
        out_shape=jax.ShapeDtypeStruct((B, 4, cout_pad, HW), f32),
        grid_spec=pltpu.PrefetchScalarGridSpec(
            num_scalar_prefetch=0,
            grid=(B, n_co, n_k),
            in_specs=[
                pl.BlockSpec((1, cin_tile, HW), lambda b, c, k: (b, k, 0)),
                pl.BlockSpec((1, co_tile, cin_tile), lambda b, c, k: (k, c, 0)),
                pl.BlockSpec((1, HW), lambda b, c, k: (0, 0)),
            ],
            out_specs=pl.BlockSpec((1, 4, co_tile, HW), lambda b, c, k: (b, 0, c, 0)),
            scratch_shapes=[pltpu.VMEM((co_tile, HW), jnp.float32)],
        ),
        compiler_params=pltpu.CompilerParams(
            dimension_semantics=("parallel", "parallel", "arbitrary"),
            vmem_limit_bytes=vmem_limit,
        ),
    )(x_flat, w_k, col_ids)

    # Single fused XLA epilogue: drop padded channels, phase -> NCHW re-interleave,
    # + skip.  (See TODO(synk) at top: fold this into the kernel once lane interleaves
    # / strided stores lower reliably.)
    out = out_ph[:, :, :Cout, :].reshape(B, 2, 2, Cout, H, W)
    out = jnp.transpose(out, (0, 3, 4, 1, 5, 2)).reshape(B, Cout, 2 * H, 2 * W)
    return out + skip_nchw.astype(f32)


def ref_forward(x, weight, skip):
    """Pure-JAX reference with the module's semantics (upsample -> 1x1 conv -> IN -> +skip)."""
    B, Cin, H, W = x.shape
    xp = jnp.concatenate([x[:, :, :1], x[:, :, :-1]], axis=2)
    xn = jnp.concatenate([x[:, :, 1:], x[:, :, -1:]], axis=2)
    rA = 0.75 * x + 0.25 * xp
    rB = 0.75 * x + 0.25 * xn
    up_h = jnp.stack([rA, rB], axis=3).reshape(B, Cin, 2 * H, W)
    cl = jnp.concatenate([up_h[..., :1], up_h[..., :-1]], axis=3)
    cr = jnp.concatenate([up_h[..., 1:], up_h[..., -1:]], axis=3)
    cA = 0.75 * up_h + 0.25 * cl
    cB = 0.75 * up_h + 0.25 * cr
    up = jnp.stack([cA, cB], axis=4).reshape(B, Cin, 2 * H, 2 * W)
    conv = jnp.einsum("oc,bchw->bohw", weight, up)
    mean = conv.mean(axis=(2, 3), keepdims=True)
    var = ((conv - mean) ** 2).mean(axis=(2, 3), keepdims=True)
    return (conv - mean) * jax.lax.rsqrt(var + EPS) + skip


if __name__ == "__main__":
    B, Cin, Cout, H, W = 2, 8, 4, 16, 16

    key = jax.random.PRNGKey(0)
    kx, kskip, kw = jax.random.split(key, 3)
    x = jax.random.normal(kx, (B, Cin, H, W), dtype=jnp.float32)
    x_skip = jax.random.normal(kskip, (B, Cout, 2 * H, 2 * W), dtype=jnp.float32)
    # Deterministic synthetic 1x1 conv weight (Cout, Cin), no bias.
    weight = 0.1 * jax.random.normal(kw, (Cout, Cin), dtype=jnp.float32)

    out = upsampling_add(x, weight, x_skip)
    out = jax.block_until_ready(out)

    ref = jax.block_until_ready(ref_forward(x, weight, x_skip))
    assert out.shape == (B, Cout, 2 * H, 2 * W)
    err = float(jnp.max(jnp.abs(out - ref)))
    assert jnp.allclose(out, ref, atol=1e-3, rtol=1e-3), err

    print("KERNEL_OK")
</pallas_src>

<mosaic_0001>
module attributes {stable_mosaic.version = 11 : i64} {
  func.func @upsampling_add_kernel(%arg0: i32, %arg1: i32, %arg2: i32, %arg3: memref<1x8x256xf32, #tpu.memory_space<vmem>>, %arg4: memref<1x8x8xf32, #tpu.memory_space<vmem>>, %arg5: memref<1x256xi32, #tpu.memory_space<vmem>>, %arg6: memref<1x4x8x256xf32, #tpu.memory_space<vmem>>, %arg7: memref<8x256xf32, #tpu.memory_space<vmem>>) attributes {dimension_semantics = [#tpu.dimension_semantics<parallel>, #tpu.dimension_semantics<parallel>, #tpu.dimension_semantics<arbitrary>], iteration_bounds = array<i64: 2, 1, 1>, scalar_prefetch = 0 : i64, scratch_operands = 1 : i64, tpu.core_type = #tpu.core_type<tc>, window_params = [{transform_indices = @transform_0, window_bounds = array<i64: 1, 8, 256>}, {transform_indices = @transform_1, window_bounds = array<i64: 1, 8, 8>}, {pipeline_mode = #tpu.pipeline_mode<synchronous>, transform_indices = @transform_2, window_bounds = array<i64: 1, 256>}, {transform_indices = @transform_3, window_bounds = array<i64: 1, 4, 8, 256>}]} {
    %c0_i32 = arith.constant 0 : i32
    %0 = arith.cmpi eq, %arg2, %c0_i32 : i32
    %1 = arith.extui %0 : i1 to i32
    %c0_i32_0 = arith.constant 0 : i32
    %2 = arith.cmpi ne, %1, %c0_i32_0 : i32
    scf.if %2 {
      %cst_12 = arith.constant 0.000000e+00 : f32
      %14 = vector.broadcast %cst_12 : f32 to vector<8x256xf32>
      %c0_13 = arith.constant 0 : index
      %c0_14 = arith.constant 0 : index
      %15 = vector.load %arg7[%c0_13, %c0_14] : memref<8x256xf32, #tpu.memory_space<vmem>>, vector<8x256xf32>
      tpu.vector_store %arg7[%c0_13, %c0_14], %14 {strides = array<i32>} : memref<8x256xf32, #tpu.memory_space<vmem>>, vector<8x256xf32>,
    } else {
    }
    %c0 = arith.constant 0 : index
    %c0_1 = arith.constant 0 : index
    %3 = vector.load %arg7[%c0, %c0_1] : memref<8x256xf32, #tpu.memory_space<vmem>>, vector<8x256xf32>
    %c0_2 = arith.constant 0 : index
    %c0_3 = arith.constant 0 : index
    %c0_4 = arith.constant 0 : index
    %4 = vector.load %arg4[%c0_2, %c0_3, %c0_4] : memref<1x8x8xf32, #tpu.memory_space<vmem>>, vector<1x8x8xf32>
    %5 = vector.shape_cast %4 : vector<1x8x8xf32> to vector<8x8xf32>
    %c0_5 = arith.constant 0 : index
    %c0_6 = arith.constant 0 : index
    %c0_7 = arith.constant 0 : index
    %6 = vector.load %arg3[%c0_5, %c0_6, %c0_7] : memref<1x8x256xf32, #tpu.memory_space<vmem>>, vector<1x8x256xf32>
    %7 = vector.shape_cast %6 : vector<1x8x256xf32> to vector<8x256xf32>
    %cst = arith.constant dense<0.000000e+00> : vector<8x256xf32>
    %8 = tpu.matmul %5, %7, %cst {dimension_numbers = #tpu.dot_dimension_numbers<[1], [0], [0], [1], [0, 0, 1, 1], [], []>} : vector<8x8xf32>, vector<8x256xf32>, vector<8x256xf32> -> vector<8x256xf32>
    %9 = arith.addf %3, %8 : vector<8x256xf32>
    %c0_8 = arith.constant 0 : index
    %c0_9 = arith.constant 0 : index
    %10 = vector.load %arg7[%c0_8, %c0_9] : memref<8x256xf32, #tpu.memory_space<vmem>>, vector<8x256xf32>
    tpu.vector_store %arg7[%c0_8, %c0_9], %9 {strides = array<i32>} : memref<8x256xf32, #tpu.memory_space<vmem>>, vector<8x256xf32>,
    %c0_i32_10 = arith.constant 0 : i32
    %11 = arith.cmpi eq, %arg2, %c0_i32_10 : i32
    %12 = arith.extui %11 : i1 to i32
    %c0_i32_11 = arith.constant 0 : i32
    %13 = arith.cmpi ne, %12, %c0_i32_11 : i32
    scf.if %13 {
      %c0_12 = arith.constant 0 : index
      %c0_13 = arith.constant 0 : index
      %14 = vector.load %arg7[%c0_12, %c0_13] : memref<8x256xf32, #tpu.memory_space<vmem>>, vector<8x256xf32>
      %15 = tpu.iota {dimensions = array<i32: 1>} : vector<1x256xi32>
      %c0_14 = arith.constant 0 : index
      %c0_15 = arith.constant 0 : index
      %16 = vector.load %arg5[%c0_14, %c0_15] : memref<1x256xi32, #tpu.memory_space<vmem>>, vector<1x256xi32>
      %c16_i32 = arith.constant 16 : i32
      %17 = vector.broadcast %c16_i32 : i32 to vector<1x256xi32>
      %18 = arith.cmpi slt, %15, %17 : vector<1x256xi32>
      %c240_i32 = arith.constant 240 : i32
      %19 = vector.broadcast %c240_i32 : i32 to vector<1x256xi32>
      %20 = arith.cmpi sge, %15, %19 : vector<1x256xi32>
      %c0_i32_16 = arith.constant 0 : i32
      %21 = vector.broadcast %c0_i32_16 : i32 to vector<1x256xi32>
      %22 = arith.cmpi eq, %16, %21 : vector<1x256xi32>
      %c15_i32 = arith.constant 15 : i32
      %23 = vector.broadcast %c15_i32 : i32 to vector<1x256xi32>
      %24 = arith.cmpi eq, %16, %23 : vector<1x256xi32>
      %c16_i32_17 = arith.constant 16 : i32
      %25 = tpu.dynamic_rotate %14 by %c16_i32_17 dim 1 : vector<8x256xf32>, i32 -> vector<8x256xf32>
      %26 = vector.shape_cast %18 : vector<1x256xi1> to vector<1x256xi1>
      %27 = vector.broadcast %26 : vector<1x256xi1> to vector<8x256xi1>
      %28 = arith.select %27, %14, %25 : vector<8x256xi1>, vector<8x256xf32>
      %c240_i32_18 = arith.constant 240 : i32
      %29 = tpu.dynamic_rotate %14 by %c240_i32_18 dim 1 : vector<8x256xf32>, i32 -> vector<8x256xf32>
      %30 = vector.shape_cast %20 : vector<1x256xi1> to vector<1x256xi1>
      %31 = vector.broadcast %30 : vector<1x256xi1> to vector<8x256xi1>
      %32 = arith.select %31, %14, %29 : vector<8x256xi1>, vector<8x256xf32>
      %cst_19 = arith.constant 7.500000e-01 : f32
      %33 = vector.broadcast %cst_19 : f32 to vector<8x256xf32>
      %34 = arith.mulf %33, %14 : vector<8x256xf32>
      %cst_20 = arith.constant 2.500000e-01 : f32
      %35 = vector.broadcast %cst_20 : f32 to vector<8x256xf32>
      %36 = arith.mulf %35, %28 : vector<8x256xf32>
      %37 = arith.addf %34, %36 : vector<8x256xf32>
      %cst_21 = arith.constant 7.500000e-01 : f32
      %38 = vector.broadcast %cst_21 : f32 to vector<8x256xf32>
      %39 = arith.mulf %38, %14 : vector<8x256xf32>
      %cst_22 = arith.constant 2.500000e-01 : f32
      %40 = vector.broadcast %cst_22 : f32 to vector<8x256xf32>
      %41 = arith.mulf %40, %32 : vector<8x256xf32>
      %42 = arith.addf %39, %41 : vector<8x256xf32>
      %c1_i32 = arith.constant 1 : i32
      %43 = tpu.dynamic_rotate %37 by %c1_i32 dim 1 : vector<8x256xf32>, i32 -> vector<8x256xf32>
      %44 = vector.shape_cast %22 : vector<1x256xi1> to vector<1x256xi1>
      %45 = vector.broadcast %44 : vector<1x256xi1> to vector<8x256xi1>
      %46 = arith.select %45, %37, %43 : vector<8x256xi1>, vector<8x256xf32>
      %c255_i32 = arith.constant 255 : i32
      %47 = tpu.dynamic_rotate %37 by %c255_i32 dim 1 : vector<8x256xf32>, i32 -> vector<8x256xf32>
      %48 = vector.shape_cast %24 : vector<1x256xi1> to vector<1x256xi1>
      %49 = vector.broadcast %48 : vector<1x256xi1> to vector<8x256xi1>
      %50 = arith.select %49, %37, %47 : vector<8x256xi1>, vector<8x256xf32>
      %cst_23 = arith.constant 7.500000e-01 : f32
      %51 = vector.broadcast %cst_23 : f32 to vector<8x256xf32>
      %52 = arith.mulf %51, %37 : vector<8x256xf32>
      %cst_24 = arith.constant 2.500000e-01 : f32
      %53 = vector.broadcast %cst_24 : f32 to vector<8x256xf32>
      %54 = arith.mulf %53, %46 : vector<8x256xf32>
      %55 = arith.addf %52, %54 : vector<8x256xf32>
      %cst_25 = arith.constant 7.500000e-01 : f32
      %56 = vector.broadcast %cst_25 : f32 to vector<8x256xf32>
      %57 = arith.mulf %56, %37 : vector<8x256xf32>
      %cst_26 = arith.constant 2.500000e-01 : f32
      %58 = vector.broadcast %cst_26 : f32 to vector<8x256xf32>
      %59 = arith.mulf %58, %50 : vector<8x256xf32>
      %60 = arith.addf %57, %59 : vector<8x256xf32>
      %c1_i32_27 = arith.constant 1 : i32
      %61 = tpu.dynamic_rotate %42 by %c1_i32_27 dim 1 : vector<8x256xf32>, i32 -> vector<8x256xf32>
      %62 = vector.shape_cast %22 : vector<1x256xi1> to vector<1x256xi1>
      %63 = vector.broadcast %62 : vector<1x256xi1> to vector<8x256xi1>
      %64 = arith.select %63, %42, %61 : vector<8x256xi1>, vector<8x256xf32>
      %c255_i32_28 = arith.constant 255 : i32
      %65 = tpu.dynamic_rotate %42 by %c255_i32_28 dim 1 : vector<8x256xf32>, i32 -> vector<8x256xf32>
      %66 = vector.shape_cast %24 : vector<1x256xi1> to vector<1x256xi1>
      %67 = vector.broadcast %66 : vector<1x256xi1> to vector<8x256xi1>
      %68 = arith.select %67, %42, %65 : vector<8x256xi1>, vector<8x256xf32>
      %cst_29 = arith.constant 7.500000e-01 : f32
      %69 = vector.broadcast %cst_29 : f32 to vector<8x256xf32>
      %70 = arith.mulf %69, %42 : vector<8x256xf32>
      %cst_30 = arith.constant 2.500000e-01 : f32
      %71 = vector.broadcast %cst_30 : f32 to vector<8x256xf32>
      %72 = arith.mulf %71, %64 : vector<8x256xf32>
      %73 = arith.addf %70, %72 : vector<8x256xf32>
      %cst_31 = arith.constant 7.500000e-01 : f32
      %74 = vector.broadcast %cst_31 : f32 to vector<8x256xf32>
      %75 = arith.mulf %74, %42 : vector<8x256xf32>
      %cst_32 = arith.constant 2.500000e-01 : f32
      %76 = vector.broadcast %cst_32 : f32 to vector<8x256xf32>
      %77 = arith.mulf %76, %68 : vector<8x256xf32>
      %78 = arith.addf %75, %77 : vector<8x256xf32>
      %79 = arith.addf %55, %60 : vector<8x256xf32>
      %80 = arith.addf %73, %78 : vector<8x256xf32>
      %81 = arith.addf %79, %80 : vector<8x256xf32>
      %82 = arith.mulf %55, %55 : vector<8x256xf32>
      %83 = arith.mulf %60, %60 : vector<8x256xf32>
      %84 = arith.addf %82, %83 : vector<8x256xf32>
      %85 = arith.mulf %73, %73 : vector<8x256xf32>
      %86 = arith.mulf %78, %78 : vector<8x256xf32>
      %87 = arith.addf %85, %86 : vector<8x256xf32>
      %88 = arith.addf %84, %87 : vector<8x256xf32>
      %cst_33 = arith.constant dense<0.000000e+00> : vector<8xf32>
      %89 = vector.multi_reduction <add>, %81, %cst_33 [1] : vector<8x256xf32> to vector<8xf32>
      %90 = vector.shape_cast %89 : vector<8xf32> to vector<8x1xf32>
      %cst_34 = arith.constant 9.765625E-4 : f32
      %91 = vector.broadcast %cst_34 : f32 to vector<8x1xf32>
      %92 = arith.mulf %90, %91 : vector<8x1xf32>
      %cst_35 = arith.constant dense<0.000000e+00> : vector<8xf32>
      %93 = vector.multi_reduction <add>, %88, %cst_35 [1] : vector<8x256xf32> to vector<8xf32>
      %94 = vector.shape_cast %93 : vector<8xf32> to vector<8x1xf32>
      %cst_36 = arith.constant 9.765625E-4 : f32
      %95 = vector.broadcast %cst_36 : f32 to vector<8x1xf32>
      %96 = arith.mulf %94, %95 : vector<8x1xf32>
      %97 = arith.mulf %92, %92 : vector<8x1xf32>
      %98 = arith.subf %96, %97 : vector<8x1xf32>
      %cst_37 = arith.constant 0.000000e+00 : f32
      %99 = vector.broadcast %cst_37 : f32 to vector<8x1xf32>
      %100 = arith.maximumf %98, %99 : vector<8x1xf32>
      %cst_38 = arith.constant 9.99999974E-6 : f32
      %101 = vector.broadcast %cst_38 : f32 to vector<8x1xf32>
      %102 = arith.addf %100, %101 : vector<8x1xf32>
      %103 = math.rsqrt %102 : vector<8x1xf32>
      %cst_39 = arith.constant 0.000000e+00 : f32
      %104 = vector.broadcast %cst_39 : f32 to vector<8x1xf32>
      %105 = arith.subf %104, %92 : vector<8x1xf32>
      %106 = arith.mulf %105, %103 : vector<8x1xf32>
      %107 = vector.shape_cast %103 : vector<8x1xf32> to vector<8x1xf32>
      %108 = vector.broadcast %107 : vector<8x1xf32> to vector<8x256xf32>
      %109 = vector.shape_cast %106 : vector<8x1xf32> to vector<8x1xf32>
      %110 = vector.broadcast %109 : vector<8x1xf32> to vector<8x256xf32>
      %111 = arith.mulf %55, %108 : vector<8x256xf32>
      %112 = arith.addf %111, %110 : vector<8x256xf32>
      %c0_40 = arith.constant 0 : index
      %c0_41 = arith.constant 0 : index
      %c0_42 = arith.constant 0 : index
      %c0_43 = arith.constant 0 : index
      %113 = vector.load %arg6[%c0_40, %c0_41, %c0_42, %c0_43] : memref<1x4x8x256xf32, #tpu.memory_space<vmem>>, vector<1x1x8x256xf32>
      %114 = vector.shape_cast %113 : vector<1x1x8x256xf32> to vector<8x256xf32>
      %115 = vector.shape_cast %112 : vector<8x256xf32> to vector<1x1x8x256xf32>
      tpu.vector_store %arg6[%c0_40, %c0_41, %c0_42, %c0_43], %115 {strides = array<i32>} : memref<1x4x8x256xf32, #tpu.memory_space<vmem>>, vector<1x1x8x256xf32>,
      %116 = arith.mulf %60, %108 : vector<8x256xf32>
      %117 = arith.addf %116, %110 : vector<8x256xf32>
      %c0_44 = arith.constant 0 : index
      %c1 = arith.constant 1 : index
      %c0_45 = arith.constant 0 : index
      %c0_46 = arith.constant 0 : index
      %118 = vector.load %arg6[%c0_44, %c1, %c0_45, %c0_46] : memref<1x4x8x256xf32, #tpu.memory_space<vmem>>, vector<1x1x8x256xf32>
      %119 = vector.shape_cast %118 : vector<1x1x8x256xf32> to vector<8x256xf32>
      %120 = vector.shape_cast %117 : vector<8x256xf32> to vector<1x1x8x256xf32>
      tpu.vector_store %arg6[%c0_44, %c1, %c0_45, %c0_46], %120 {strides = array<i32>} : memref<1x4x8x256xf32, #tpu.memory_space<vmem>>, vector<1x1x8x256xf32>,
      %121 = arith.mulf %73, %108 : vector<8x256xf32>
      %122 = arith.addf %121, %110 : vector<8x256xf32>
      %c0_47 = arith.constant 0 : index
      %c2 = arith.constant 2 : index
      %c0_48 = arith.constant 0 : index
      %c0_49 = arith.constant 0 : index
      %123 = vector.load %arg6[%c0_47, %c2, %c0_48, %c0_49] : memref<1x4x8x256xf32, #tpu.memory_space<vmem>>, vector<1x1x8x256xf32>
      %124 = vector.shape_cast %123 : vector<1x1x8x256xf32> to vector<8x256xf32>
      %125 = vector.shape_cast %122 : vector<8x256xf32> to vector<1x1x8x256xf32>
      tpu.vector_store %arg6[%c0_47, %c2, %c0_48, %c0_49], %125 {strides = array<i32>} : memref<1x4x8x256xf32, #tpu.memory_space<vmem>>, vector<1x1x8x256xf32>,
      %126 = arith.mulf %78, %108 : vector<8x256xf32>
      %127 = arith.addf %126, %110 : vector<8x256xf32>
      %c0_50 = arith.constant 0 : index
      %c3 = arith.constant 3 : index
      %c0_51 = arith.constant 0 : index
      %c0_52 = arith.constant 0 : index
      %128 = vector.load %arg6[%c0_50, %c3, %c0_51, %c0_52] : memref<1x4x8x256xf32, #tpu.memory_space<vmem>>, vector<1x1x8x256xf32>
      %129 = vector.shape_cast %128 : vector<1x1x8x256xf32> to vector<8x256xf32>
      %130 = vector.shape_cast %127 : vector<8x256xf32> to vector<1x1x8x256xf32>
      tpu.vector_store %arg6[%c0_50, %c3, %c0_51, %c0_52], %130 {strides = array<i32>} : memref<1x4x8x256xf32, #tpu.memory_space<vmem>>, vector<1x1x8x256xf32>,
    } else {
    }
    return
  }
  func.func @transform_0(%arg0: i32, %arg1: i32, %arg2: i32) -> (i32, i32, i32) {
    %c0_i32 = arith.constant 0 : i32
    %c0_i32_0 = arith.constant 0 : i32
    return %arg0, %arg2, %c0_i32 : i32, i32, i32
  }
  func.func @transform_1(%arg0: i32, %arg1: i32, %arg2: i32) -> (i32, i32, i32) {
    %c0_i32 = arith.constant 0 : i32
    %c0_i32_0 = arith.constant 0 : i32
    return %arg2, %arg1, %c0_i32 : i32, i32, i32
  }
  func.func @transform_2(%arg0: i32, %arg1: i32, %arg2: i32) -> (i32, i32) {
    %c0_i32 = arith.constant 0 : i32
    %c0_i32_0 = arith.constant 0 : i32
    %c0_i32_1 = arith.constant 0 : i32
    return %c0_i32, %c0_i32_0 : i32, i32
  }
  func.func @transform_3(%arg0: i32, %arg1: i32, %arg2: i32) -> (i32, i32, i32, i32) {
    %c0_i32 = arith.constant 0 : i32
    %c0_i32_0 = arith.constant 0 : i32
    %c0_i32_1 = arith.constant 0 : i32
    return %arg0, %c0_i32, %arg1, %c0_i32_0 : i32, i32, i32, i32
  }
}

</mosaic_0001>

<llo_original>
// kernel: tile.9
$region0: #{tile.9}
  %s0 = inlined_call_operand.vmem [shape: s32[16,16], index: 0, kind: input, shape index: {}]
  %s1 = inlined_call_operand.vmem [shape: s32[1,256], index: 1, kind: output, shape index: {}]
  $region1: #{tile.9} parent=0
    #allocation0 [shape = 'u8[8192]{0}', space=vmem, size = 0x2000, scoped, tag = 'scoped mem for output reshape']
    %s2 = smov 3
    %v3 = vld [vmem:[%s0] ss:$8 sm:%s2]
    %vm4 = vcmask 130048
    %5 = vst.msk [vmem:[#allocation0] ss:$8 sm:$0x3] %vm4, %v3
    %s6 = scalar_lea.vmem %s0, 7
    %s7 = smov 3
    %v8 = vld [vmem:[%s6] ss:$8 sm:%s7]
    %9 = vrot.lane.b32.xlu0 %v8, 112
    %v10 = vpop.permute.xlu0 %9
    %vm11 = vcmask 1048448
    %12 = vst.msk [vmem:[#allocation0] ss:$8 sm:$0x3] %vm11, %v10
    %s13 = scalar_lea.vmem %s0, 6
    %s14 = smov 3
    %v15 = vld [vmem:[%s13] ss:$8 sm:%s14]
    %16 = vrot.lane.b32.xlu0 %v15, 96
    %v17 = vpop.permute.xlu0 %16
    %vm18 = vcmask 917248
    %19 = vst.msk [vmem:[#allocation0] ss:$8 sm:$0x3] %vm18, %v17
    %s20 = scalar_lea.vmem %s0, 5
    %s21 = smov 3
    %v22 = vld [vmem:[%s20] ss:$8 sm:%s21]
    %23 = vrot.lane.b32.xlu0 %v22, 80
    %v24 = vpop.permute.xlu0 %23
    %vm25 = vcmask 786048
    %26 = vst.msk [vmem:[#allocation0] ss:$8 sm:$0x3] %vm25, %v24
    %s27 = scalar_lea.vmem %s0, 4
    %s28 = smov 3
    %v29 = vld [vmem:[%s27] ss:$8 sm:%s28]
    %30 = vrot.lane.b32.xlu0 %v29, 64
    %v31 = vpop.permute.xlu0 %30
    %vm32 = vcmask 654848
    %33 = vst.msk [vmem:[#allocation0] ss:$8 sm:$0x3] %vm32, %v31
    %s34 = scalar_lea.vmem %s0, 3
    %s35 = smov 3
    %v36 = vld [vmem:[%s34] ss:$8 sm:%s35]
    %37 = vrot.lane.b32.xlu0 %v36, 48
    %v38 = vpop.permute.xlu0 %37
    %vm39 = vcmask 523648
    %40 = vst.msk [vmem:[#allocation0] ss:$8 sm:$0x3] %vm39, %v38
    %s41 = scalar_lea.vmem %s0, 2
    %s42 = smov 3
    %v43 = vld [vmem:[%s41] ss:$8 sm:%s42]
    %44 = vrot.lane.b32.xlu0 %v43, 32
    %v45 = vpop.permute.xlu0 %44
    %vm46 = vcmask 392448
    %47 = vst.msk [vmem:[#allocation0] ss:$8 sm:$0x3] %vm46, %v45
    %s48 = scalar_lea.vmem %s0, 1
    %s49 = smov 3
    %v50 = vld [vmem:[%s48] ss:$8 sm:%s49]
    %51 = vrot.lane.b32.xlu0 %v50, 16
    %v52 = vpop.permute.xlu0 %51
    %vm53 = vcmask 261248
    %54 = vst.msk [vmem:[#allocation0] ss:$8 sm:$0x3] %vm53, %v52
    %s56 = sshllo.u32 0, 1
    %v58 = vld [vmem:[#allocation0] sm:%s56]
    %s59 = sshllo.u32 0, 1
    %60 = vst [vmem:[%s1] sm:%s59] %v58
    %s61 = scalar_lea.vmem [#allocation0], 8
    %v62 = vld [vmem:[%s61] sm:%s56]
    %s63 = sshllo.u32 0, 1
    %s64 = scalar_lea.vmem %s1, 1
    %65 = vst [vmem:[%s64] sm:%s63] %v62

// kernel: upsampling_add.1
$region0: #{upsampling_add.1}
  #allocation0 [shape = 'u32[]', space=smem, size = 0x4, offset = 0x4, fixed_abs, tag = 'smem constant byte address 0x4 - core index']
  #allocation1 [shape = 'u32[144,128]{1,0:T(1,128)}', space=vmem, size = 0x12000, scoped, tag = 'internal scratch']
  #allocation2 [shape = 'f32[8,256]{1,0:T(8,128)}', space=vmem, size = 0x2000, scoped, tag = 'scratch operand']
  %s0 = inlined_call_operand.vmem [shape: f32[2,8,256], index: 0, kind: input, shape index: {}]
  %s1 = inlined_call_operand.vmem [shape: f32[1,8,8], index: 1, kind: input, shape index: {}]
  %s2 = inlined_call_operand.vmem [shape: s32[1,256], index: 2, kind: input, shape index: {}]
  %s3 = inlined_call_operand.vmem [shape: f32[2,4,8,256], index: 3, kind: output, shape index: {}]
  %s4 = sld [smem:[#allocation0]]
  $region53: #{upsampling_add.1} parent=0
    _
  %s6 = ssub.s32 1, %s4
  %s7 = scalar_select 0, %s6, %s4
  loop: start=0, step=1, limit=4
  $region2: #{upsampling_add.1} parent=0 // loop_pre_header
    _
  $region3: #{upsampling_add.1} parent=0 // loop_header
    %s9 = sphi 0, %s13
    %p10 = scmp.ge.s32.totalorder %s9, 4
    %s16 = sphi 0, %s35
    %s17 = sphi 0, %s31
    %s18 = sphi 0, %s27
    %s19 = sphi 0, %s16
    %s20 = sphi 0, %s17
    %s21 = sphi 0, %s18
    %s22 = sphi 0, %s19
    %s23 = sphi 0, %s20
    %s24 = sphi 0, %s21
    %s40 = sphi 0, %s42
    %s43 = sphi 0, %s40
    %s44 = sphi 0, %s43
    %s60 = sphi 0, %s44
    %s68 = sphi 0, %s70
    %s71 = sphi 0, %s68
    %s72 = sphi 0, %s71
    %s88 = sphi 0, %s72
    %s92 = sphi 0, %s92
    %s94 = sphi 0, %s92
    %s95 = sphi 0, %s94
    %s109 = sphi 0, %s95
    %s117 = sphi 0, %s119
    %s120 = sphi 0, %s117
    %s121 = sphi 0, %s120
    %s137 = sphi 0, %s121
  $region4: #{upsampling_add.1} parent=0 // loop_header_branch
    %12 = sbr.rel (%p10) target = $region8
  $region5: #{upsampling_add.1} parent=0 // loop_body
    %s14 = ssub.s32 %s9, 1
    %s15 = ssub.s32 %s9, 2
    %s25 = sadd.s32 1, %s18
    %p26 = scmp.ge.s32.totalorder %s25, 1
    %s27 = scalar_select %p26, 0, %s25
    %s28 = sadd.s32 1, %s17
    %s29 = scalar_select %p26, %s28, %s17
    %p30 = scmp.ge.s32.totalorder %s29, 1
    %s31 = scalar_select %p30, 0, %s29
    %s32 = sadd.s32 1, %s16
    %s33 = scalar_select %p30, %s32, %s16
    %p34 = scmp.ge.s32.totalorder %s33, 2
    %s35 = scalar_select %p34, 0, %s33
    %s36 = ssub.s32 %s16, %s35
    %s37 = ssub.s32 %s18, %s27
    %s38 = sor.u32 %s36, %s37
    %p39 = scmp.eq.s32.totalorder %s38, 0
    %s41 = sadd.s32 %s40, 1
    %s42 = scalar_select %p39, %s40, %s41
    %p45 = pneg %p39
    %p46 = scmp.eq.s32.totalorder %s9, 1
    %p47 = por %p45, %p46
    %p48 = scmp.ne.s32.totalorder %s40, %s43
    %p49 = scmp.eq.s32.totalorder %s9, 0
    %p50 = por %p48, %p49
    %p51 = scmp.ne.s32.totalorder %s40, %s43
    %p52 = scmp.eq.s32.totalorder %s14, 1
    %p53 = por %p51, %p52
    %p54 = scmp.ne.s32.totalorder %s43, %s44
    %p55 = scmp.eq.s32.totalorder %s14, 0
    %p56 = por %p54, %p55
    %p57 = scmp.ne.s32.totalorder %s43, %s44
    %p58 = scmp.eq.s32.totalorder %s15, 1
    %p59 = por %p57, %p58
    %p61 = scmp.ne.s32.totalorder %s44, %s60
    %p62 = scmp.eq.s32.totalorder %s15, 0
    %p63 = por %p61, %p62
    %s64 = ssub.s32 %s18, %s27
    %s65 = ssub.s32 %s17, %s31
    %s66 = sor.u32 %s64, %s65
    %p67 = scmp.eq.s32.totalorder %s66, 0
    %s69 = sadd.s32 %s68, 1
    %s70 = scalar_select %p67, %s68, %s69
    %p73 = pneg %p67
    %p74 = scmp.eq.s32.totalorder %s9, 1
    %p75 = por %p73, %p74
    %p76 = scmp.ne.s32.totalorder %s68, %s71
    %p77 = scmp.eq.s32.totalorder %s9, 0
    %p78 = por %p76, %p77
    %p79 = scmp.ne.s32.totalorder %s68, %s71
    %p80 = scmp.eq.s32.totalorder %s14, 1
    %p81 = por %p79, %p80
    %p82 = scmp.ne.s32.totalorder %s71, %s72
    %p83 = scmp.eq.s32.totalorder %s14, 0
    %p84 = por %p82, %p83
    %p85 = scmp.ne.s32.totalorder %s71, %s72
    %p86 = scmp.eq.s32.totalorder %s15, 1
    %p87 = por %p85, %p86
    %p89 = scmp.ne.s32.totalorder %s72, %s88
    %p90 = scmp.eq.s32.totalorder %s15, 0
    %p91 = por %p89, %p90
    %s93 = sadd.s32 %s92, 1
    %p96 = scmp.eq.s32.totalorder %s9, 1
    %p97 = scmp.ne.s32.totalorder %s92, %s94
    %p98 = scmp.eq.s32.totalorder %s9, 0
    %p99 = por %p97, %p98
    %p100 = scmp.ne.s32.totalorder %s92, %s94
    %p101 = scmp.eq.s32.totalorder %s14, 1
    %p102 = por %p100, %p101
    %p103 = scmp.ne.s32.totalorder %s94, %s95
    %p104 = scmp.eq.s32.totalorder %s14, 0
    %p105 = por %p103, %p104
    %p106 = scmp.ne.s32.totalorder %s94, %s95
    %p107 = scmp.eq.s32.totalorder %s15, 1
    %p108 = por %p106, %p107
    %p110 = scmp.ne.s32.totalorder %s95, %s109
    %p111 = scmp.eq.s32.totalorder %s15, 0
    %p112 = por %p110, %p111
    %s113 = ssub.s32 %s16, %s35
    %s114 = ssub.s32 %s17, %s31
    %s115 = sor.u32 %s113, %s114
    %p116 = scmp.eq.s32.totalorder %s115, 0
    %s118 = sadd.s32 %s117, 1
    %s119 = scalar_select %p116, %s117, %s118
    %p122 = pneg %p116
    %p123 = scmp.eq.s32.totalorder %s9, 1
    %p124 = por %p122, %p123
    %p125 = scmp.ne.s32.totalorder %s117, %s120
    %p126 = scmp.eq.s32.totalorder %s9, 0
    %p127 = por %p125, %p126
    %p128 = scmp.ne.s32.totalorder %s117, %s120
    %p129 = scmp.eq.s32.totalorder %s14, 1
    %p130 = por %p128, %p129
    %p131 = scmp.ne.s32.totalorder %s120, %s121
    %p132 = scmp.eq.s32.totalorder %s14, 0
    %p133 = por %p131, %p132
    %p134 = scmp.ne.s32.totalorder %s120, %s121
    %p135 = scmp.eq.s32.totalorder %s15, 1
    %p136 = por %p134, %p135
    %p138 = scmp.ne.s32.totalorder %s121, %s137
    %p139 = scmp.eq.s32.totalorder %s15, 0
    %p140 = por %p138, %p139
    %p141 = scmp.le.s32.totalorder 1, %s9
    %p142 = scmp.lt.s32.totalorder %s9, 3
    %p143 = pnand %p141, %p142
    %p144 = pneg %p143
    // Predicated region
    $region9: #{upsampling_add.1} parent=5 // pred_check
      _
    $region10: #{upsampling_add.1} parent=5 // pred_check_branch
      %146 = sbr.rel (%p143) target = $region12
    $region11: #{upsampling_add.1} parent=5 // pred_region
      %s147 = ssub.s32 %s9, 1
      // Predicated region
      $region13: #{upsampling_add.1} parent=11 // pred_check
        %p148 = pneg %p84
      $region14: #{upsampling_add.1} parent=11 // pred_check_branch
        %150 = sbr.rel (%p148) target = $region16
      $region15: #{upsampling_add.1} parent=11 // pred_region
        %p151 = scmp.lt.s32.totalorder %s21, 0
        %s152 = scalar_select %p151, %s21, 0
        %p153 = scmp.lt.s32.totalorder %s20, 0
        %s154 = scalar_select %p153, %s20, 0
        %s155 = sadd.s32 %s154, %s152
        %s156 = smul.addr %s155, 8
        %s157 = scalar_lea.vmem %s1, %s156
      $region16: #{upsampling_add.1} parent=11 // pred_fallthru
        _
      // Predicated region
      $region17: #{upsampling_add.1} parent=11 // pred_check
        %p158 = pneg %p105
      $region18: #{upsampling_add.1} parent=11 // pred_check_branch
        %160 = sbr.rel (%p158) target = $region20
      $region19: #{upsampling_add.1} parent=11 // pred_region
        _
      $region20: #{upsampling_add.1} parent=11 // pred_fallthru
        _
    $region12: #{upsampling_add.1} parent=5 // pred_fallthru
      _
    %p161 = scmp.lt.s32.totalorder %s9, 2
    // Predicated region
    $region21: #{upsampling_add.1} parent=5 // pred_check
      %p162 = pneg %p161
    $region22: #{upsampling_add.1} parent=5 // pred_check_branch
      %164 = sbr.rel (%p162) target = $region24
    $region23: #{upsampling_add.1} parent=5 // pred_region
      // Predicated region
      $region25: #{upsampling_add.1} parent=23 // pred_check
        %p165 = pneg %p50
      $region26: #{upsampling_add.1} parent=23 // pred_check_branch
        %167 = sbr.rel (%p165) target = $region28
      $region27: #{upsampling_add.1} parent=23 // pred_region
        %p168 = scmp.lt.s32.totalorder %s16, 1
        %s169 = scalar_select %p168, %s16, 1
        %p170 = scmp.lt.s32.totalorder %s18, 0
        %s171 = scalar_select %p170, %s18, 0
        %s172 = smul.addr %s171, 2
        %s173 = smul.addr %s169, 2
        %s174 = sadd.s32 %s172, %s173
        %s175 = smul.addr %s174, 8
        %s176 = scalar_lea.vmem %s0, %s175
      $region28: #{upsampling_add.1} parent=23 // pred_fallthru
        _
    $region24: #{upsampling_add.1} parent=5 // pred_fallthru
      _
    %p177 = scmp.le.s32.totalorder 1, %s9
    %p178 = scmp.lt.s32.totalorder %s9, 3
    %p179 = pnand %p177, %p178
    %p180 = pneg %p179
    // Predicated region
    $region29: #{upsampling_add.1} parent=5 // pred_check
      _
    $region30: #{upsampling_add.1} parent=5 // pred_check_branch
      %182 = sbr.rel (%p179) target = $region32
    $region31: #{upsampling_add.1} parent=5 // pred_region
      %s183 = ssub.s32 %s9, 1
      %p184 = scmp.lt.s32.totalorder %s19, 1
      %s185 = scalar_select %p184, %s19, 1
      %p186 = scmp.lt.s32.totalorder %s21, 0
      %s187 = scalar_select %p186, %s21, 0
      %s188 = smul.addr %s187, 2
      %s189 = smul.addr %s185, 2
      %s190 = sadd.s32 %s188, %s189
      %s191 = smul.addr %s190, 8
      %s192 = scalar_lea.vmem %s0, %s191
      %p193 = pneg %p56
      %p194 = pneg %p53
      %p195 = scmp.lt.s32.totalorder %s21, 0
      %s196 = scalar_select %p195, %s21, 0
      %p197 = scmp.lt.s32.totalorder %s20, 0
      %s198 = scalar_select %p197, %s20, 0
      %s199 = sadd.s32 %s198, %s196
      %s200 = smul.addr %s199, 8
      %s201 = scalar_lea.vmem %s1, %s200
      %p202 = pneg %p84
      %p203 = pneg %p81
      %p204 = pneg %p105
      %p205 = pneg %p102
      %p206 = pneg %p133
      %p207 = pneg %p130
      %p208 = scmp.lt.s32.totalorder %s19, 1
      %s209 = scalar_select %p208, %s19, 1
      %p210 = scmp.lt.s32.totalorder %s20, 0
      %s211 = scalar_select %p210, %s20, 0
      %s212 = smul.addr %s211, 2
      %s213 = smul.addr %s209, 8
      %s214 = sadd.s32 %s212, %s213
      %s215 = smul.addr %s214, 8
      %s216 = scalar_lea.vmem %s3, %s215
      %p217 = scmp.lt.s32.totalorder %s19, 1
      %s218 = scalar_select %p217, %s19, 1
      %p219 = scmp.lt.s32.totalorder %s21, 0
      %s220 = scalar_select %p219, %s21, 0
      %s221 = smul.addr %s220, 2
      %s222 = smul.addr %s218, 2
      %s223 = sadd.s32 %s221, %s222
      %s224 = smul.addr %s223, 8
      %s225 = scalar_lea.vmem %s0, %s224
      %p226 = scmp.lt.s32.totalorder %s21, 0
      %s227 = scalar_select %p226, %s21, 0
      %p228 = scmp.lt.s32.totalorder %s20, 0
      %s229 = scalar_select %p228, %s20, 0
      %s230 = sadd.s32 %s229, %s227
      %s231 = smul.addr %s230, 8
      %s232 = scalar_lea.vmem %s1, %s231
      %p233 = scmp.lt.s32.totalorder %s19, 1
      %s234 = scalar_select %p233, %s19, 1
      %p235 = scmp.lt.s32.totalorder %s20, 0
      %s236 = scalar_select %p235, %s20, 0
      %s237 = smul.addr %s236, 2
      %s238 = smul.addr %s234, 8
      %s239 = sadd.s32 %s237, %s238
      %s240 = smul.addr %s239, 8
      %s241 = scalar_lea.vmem %s3, %s240
      %p242 = scmp.eq.s32.totalorder %s21, 0
      // Predicated region
      $region33: #{upsampling_add.1} parent=31 // pred_check
        %p243 = pneg %p242
      $region34: #{upsampling_add.1} parent=31 // pred_check_branch
        %245 = sbr.rel (%p243) target = $region36
      $region35: #{upsampling_add.1} parent=31 // pred_region
        %246 = vst [vmem:[#allocation2] sm:$0xff] 0.0
        %247 = vst [vmem:[#allocation2 + $0x8] sm:$0xff] 0.0
      $region36: #{upsampling_add.1} parent=31 // pred_fallthru
        _
      %v248 = vld [vmem:[#allocation2] sm:$0xff]
      %v249 = vld [vmem:[#allocation2 + $0x8] sm:$0xff]
      %v250 = vld [vmem:[%s232] sm:$0xff]
      %v251 = vld [vmem:[%s225] sm:$0xff]
      %v252 = vld [vmem:[%s225 + $0x8] sm:$0xff]
      %vm253 = vcmask 64512
      %v255 = vsel %vm253, %v250, 0
      %257 = vmatprep.subr.mxu0 %v252
      %258 = vmatpush1.msra.mxu0 %v251
      %259 = vmatprep.subr.mxu0 0.0
      %260 = vmatpush1.msra.mxu0 0.0
      %261 = vmatprep.subr.mxu0 0.0
      %262 = vmatpush1.msra.mxu0 0.0
      %263 = vmatprep.subr.mxu0 0.0
      %264 = vmatpush1.msra.mxu0 0.0
      %265 = vmatprep.subr.mxu0 0.0
      %266 = vmatpush1.msra.mxu0 0.0
      %267 = vmatprep.subr.mxu0 0.0
      %268 = vmatpush1.msra.mxu0 0.0
      %269 = vmatprep.subr.mxu0 0.0
      %270 = vmatpush1.msra.mxu0 0.0
      %271 = vmatprep.subr.mxu0 0.0
      %272 = vmatpush1.msra.mxu0 0.0
      %273 = vmatprep.subr.mxu0 0.0
      %274 = vmatpush1.msra.mxu0 0.0
      %275 = vmatprep.subr.mxu0 0.0
      %276 = vmatpush1.msra.mxu0 0.0
      %277 = vmatprep.subr.mxu0 0.0
      %278 = vmatpush1.msra.mxu0 0.0
      %279 = vmatprep.subr.mxu0 0.0
      %280 = vmatpush1.msra.mxu0 0.0
      %281 = vmatprep.subr.mxu0 0.0
      %282 = vmatpush1.msra.mxu0 0.0
      %283 = vmatprep.subr.mxu0 0.0
      %284 = vmatpush1.msra.mxu0 0.0
      %285 = vmatprep.subr.mxu0 0.0
      %286 = vmatpush1.msra.mxu0 0.0
      %287 = vmatprep.subr.mxu0 0.0
      %288 = vmatpush1.msra.mxu0 0.0
      %289 = vmatprep.subr.mxu0 0.0
      %290 = vmatpush1.msra.mxu0 0.0
      %291 = vmatprep.subr.mxu0 0.0
      %292 = vmatpush1.msra.mxu0 0.0
      %293 = vmatprep.subr.mxu0 0.0
      %294 = vmatpush1.msra.mxu0 0.0
      %295 = vmatprep.subr.mxu0 0.0
      %296 = vmatpush1.msra.mxu0 0.0
      %297 = vmatprep.subr.mxu0 0.0
      %298 = vmatpush1.msra.mxu0 0.0
      %299 = vmatprep.subr.mxu0 0.0
      %300 = vmatpush1.msra.mxu0 0.0
      %301 = vmatprep.subr.mxu0 0.0
      %302 = vmatpush1.msra.mxu0 0.0
      %303 = vmatprep.subr.mxu0 0.0
      %304 = vmatpush1.msra.mxu0 0.0
      %305 = vmatprep.subr.mxu0 0.0
      %306 = vmatpush1.msra.mxu0 0.0
      %307 = vmatprep.subr.mxu0 0.0
      %308 = vmatpush1.msra.mxu0 0.0
      %309 = vmatprep.subr.mxu0 0.0
      %310 = vmatpush1.msra.mxu0 0.0
      %311 = vmatprep.subr.mxu0 0.0
      %312 = vmatpush1.msra.mxu0 0.0
      %313 = vmatprep.subr.mxu0 0.0
      %314 = vmatpush1.msra.mxu0 0.0
      %315 = vmatprep.subr.mxu0 0.0
      %316 = vmatpush1.msra.mxu0 0.0
      %317 = vmatprep.subr.mxu0 0.0
      %318 = vmatpush1.msra.mxu0 0.0
      %319 = vmatprep.subr.mxu0 0.0
      %320 = vmatpush1.msra.mxu0 0.0
      %321 = vmatprep.mubr.f32.mxu0 0.0
      %322 = vmatmul.mubr.f32.gmra.mrb[0].mxu0 %v255
      %v323 = vpop.f32.mrb[0].mxu0
      %v324 = vadd.f32 0.0, %v323
      %v325 = vpop.f32.mrb[0].mxu0
      %v326 = vadd.f32 0.0, %v325
      %327 = vdwg.mxu0
      %v328 = vadd.f32 %v248, %v324
      %v329 = vadd.f32 %v249, %v326
      %330 = vst [vmem:[#allocation2] sm:$0xff] %v328
      %331 = vst [vmem:[#allocation2 + $0x8] sm:$0xff] %v329
      // Predicated region
      $region37: #{upsampling_add.1} parent=31 // pred_check
        %p332 = pneg %p242
      $region38: #{upsampling_add.1} parent=31 // pred_check_branch
        %334 = sbr.rel (%p332) target = $region40
      $region39: #{upsampling_add.1} parent=31 // pred_region
        %v335 = vld [vmem:[#allocation2] sm:$0xff]
        %v336 = vld [vmem:[#allocation2 + $0x8] sm:$0xff]
        %v337 = vlaneseq
        %v338 = vand.u32 %v337, 127
        %v339 = vadd.s32 %v338, 128
        %v340 = vld [vmem:[%s2] sm:$0x3]
        %vm341 = vcmp.lt.s32.totalorder %v338, 16
        %vm342 = vcmp.lt.s32.totalorder %v339, 16
        %vm343 = vcmp.ge.s32.totalorder %v338, 240
        %vm344 = vcmp.ge.s32.totalorder %v339, 240
        %vm345 = vcmp.eq.s32.totalorder %v340, 0
        %vm346 = vcmp.eq.s32.totalorder %v340, 15
        %347 = vrot.lane.b32.xlu0 %v335, 16
        %v348 = vpop.permute.xlu0 %347
        %349 = vrot.lane.b32.xlu0 %v336, 16
        %v350 = vpop.permute.xlu0 %349
        %v351 = vsel %vm341, %v348, %v350
        %v352 = vsel %vm341, %v350, %v348
        %v353 = vsel %vm341, 1, 0
        %v354 = vsel %vm342, 1, 0
        %vm355 = vcmp.eq.s32.totalorder %v353, 1
        %vm356 = vcmp.eq.s32.totalorder %v354, 1
        %v357 = vsel %vm355, %v335, %v352
        %v358 = vsel %vm356, %v336, %v351
        %359 = vrot.lane.b32.xlu0 %v335, 112
        %v360 = vpop.permute.xlu0 %359
        %361 = vrot.lane.b32.xlu0 %v336, 112
        %v362 = vpop.permute.xlu0 %361
        %vm363 = vcmp.lt.s32.totalorder %v338, 112
        %v364 = vsel %vm363, %v360, %v362
        %v365 = vsel %vm363, %v362, %v360
        %v366 = vsel %vm343, 1, 0
        %v367 = vsel %vm344, 1, 0
        %vm368 = vcmp.eq.s32.totalorder %v366, 1
        %vm369 = vcmp.eq.s32.totalorder %v367, 1
        %v370 = vsel %vm368, %v335, %v364
        %v371 = vsel %vm369, %v336, %v365
        %v372 = vmul.f32 %v335, 0.75
        %v373 = vmul.f32 %v336, 0.75
        %v374 = vmul.f32 %v357, 0.25
        %v375 = vmul.f32 %v358, 0.25
        %v376 = vadd.f32 %v372, %v374
        %v377 = vadd.f32 %v373, %v375
        %v378 = vmul.f32 %v370, 0.25
        %v379 = vmul.f32 %v371, 0.25
        %v380 = vadd.f32 %v372, %v378
        %v381 = vadd.f32 %v373, %v379
        %382 = vrot.lane.b32.xlu0 %v376, 1
        %v383 = vpop.permute.xlu0 %382
        %384 = vrot.lane.b32.xlu0 %v377, 1
        %v385 = vpop.permute.xlu0 %384
        %vm386 = vcmp.lt.s32.totalorder %v338, 1
        %v387 = vsel %vm386, %v383, %v385
        %v388 = vsel %vm386, %v385, %v383
        %v389 = vsel %vm345, 1, 0
        %v390 = vlaneseq
        %v391 = vshrl.u32 %v390, 7
        %v392 = vsub.s32 0, %v391
        %v393 = vrot.slane %v389, %v392
        %v394 = vlaneseq
        %v395 = vshrl.u32 %v394, 7
        %v396 = vsub.s32 1, %v395
        %v397 = vrot.slane %v389, %v396
        %vm398 = vcmp.eq.s32.totalorder %v393, 1
        %vm399 = vcmp.eq.s32.totalorder %v397, 1
        %v400 = vsel %vm398, %v376, %v388
        %v401 = vsel %vm399, %v377, %v387
        %402 = vrot.lane.b32.xlu0 %v376, 127
        %v403 = vpop.permute.xlu0 %402
        %404 = vrot.lane.b32.xlu0 %v377, 127
        %v405 = vpop.permute.xlu0 %404
        %vm406 = vcmp.lt.s32.totalorder %v338, 127
        %v407 = vsel %vm406, %v403, %v405
        %v408 = vsel %vm406, %v405, %v403
        %v409 = vsel %vm346, 1, 0
        %v410 = vlaneseq
        %v411 = vshrl.u32 %v410, 7
        %v412 = vsub.s32 0, %v411
        %v413 = vrot.slane %v409, %v412
        %v414 = vlaneseq
        %v415 = vshrl.u32 %v414, 7
        %v416 = vsub.s32 1, %v415
        %v417 = vrot.slane %v409, %v416
        %vm418 = vcmp.eq.s32.totalorder %v413, 1
        %vm419 = vcmp.eq.s32.totalorder %v417, 1
        %v420 = vsel %vm418, %v376, %v407
        %v421 = vsel %vm419, %v377, %v408
        %v422 = vmul.f32 %v376, 0.75
        %v423 = vmul.f32 %v377, 0.75
        %v424 = vmul.f32 %v400, 0.25
        %v425 = vmul.f32 %v401, 0.25
        %v426 = vadd.f32 %v422, %v424
        %v427 = vadd.f32 %v423, %v425
        %v428 = vmul.f32 %v420, 0.25
        %v429 = vmul.f32 %v421, 0.25
        %v430 = vadd.f32 %v422, %v428
        %v431 = vadd.f32 %v423, %v429
        %432 = vrot.lane.b32.xlu0 %v380, 1
        %v433 = vpop.permute.xlu0 %432
        %434 = vrot.lane.b32.xlu0 %v381, 1
        %v435 = vpop.permute.xlu0 %434
        %v436 = vsel %vm386, %v433, %v435
        %v437 = vsel %vm386, %v435, %v433
        %v438 = vsel %vm398, %v380, %v437
        %v439 = vsel %vm399, %v381, %v436
        %440 = vrot.lane.b32.xlu0 %v380, 127
        %v441 = vpop.permute.xlu0 %440
        %442 = vrot.lane.b32.xlu0 %v381, 127
        %v443 = vpop.permute.xlu0 %442
        %v444 = vsel %vm406, %v441, %v443
        %v445 = vsel %vm406, %v443, %v441
        %v446 = vsel %vm418, %v380, %v444
        %v447 = vsel %vm419, %v381, %v445
        %v448 = vmul.f32 %v380, 0.75
        %v449 = vmul.f32 %v381, 0.75
        %v450 = vmul.f32 %v438, 0.25
        %v451 = vmul.f32 %v439, 0.25
        %v452 = vadd.f32 %v448, %v450
        %v453 = vadd.f32 %v449, %v451
        %v454 = vmul.f32 %v446, 0.25
        %v455 = vmul.f32 %v447, 0.25
        %v456 = vadd.f32 %v448, %v454
        %v457 = vadd.f32 %v449, %v455
        %v458 = vadd.f32 %v426, %v430
        %v459 = vadd.f32 %v427, %v431
        %v460 = vadd.f32 %v452, %v456
        %v461 = vadd.f32 %v453, %v457
        %v462 = vadd.f32 %v458, %v460
        %v463 = vadd.f32 %v459, %v461
        %v464 = vmul.f32 %v426, %v426
        %v465 = vmul.f32 %v427, %v427
        %v466 = vmul.f32 %v430, %v430
        %v467 = vmul.f32 %v431, %v431
        %v468 = vadd.f32 %v464, %v466
        %v469 = vadd.f32 %v465, %v467
        %v470 = vmul.f32 %v452, %v452
        %v471 = vmul.f32 %v453, %v453
        %v472 = vmul.f32 %v456, %v456
        %v473 = vmul.f32 %v457, %v457
        %v474 = vadd.f32 %v470, %v472
        %v475 = vadd.f32 %v471, %v473
        %v476 = vadd.f32 %v468, %v474
        %v477 = vadd.f32 %v469, %v475
        %v478 = vadd.f32 %v462, %v463
        %479 = vadd.xlane.f32.xlu0 %v478
        %v480 = vpop.xlane.xlu0 %479
        %v481 = vmul.f32 %v480, 0.0009765625
        %v482 = vadd.f32 %v476, %v477
        %483 = vadd.xlane.f32.xlu0 %v482
        %v484 = vpop.xlane.xlu0 %483
        %v485 = vmul.f32 %v484, 0.0009765625
        %v486 = vmul.f32 %v481, %v481
        %v487 = vsub.f32 %v485, %v486
        %v488 = vmax.f32 %v487, 0.0
        %v489 = vadd.f32 %v488, 1e-05
        %v490 = vrsqrt.pop %v489
        %v491 = vsub.f32 0.0, %v481
        %v492 = vmul.f32 %v491, %v490
        %v493 = vmul.f32 %v426, %v490
        %v494 = vmul.f32 %v427, %v490
        %v495 = vadd.f32 %v493, %v492
        %v496 = vadd.f32 %v494, %v492
        %497 = vst [vmem:[%s241] sm:$0xff] %v495
        %498 = vst [vmem:[%s241 + $0x8] sm:$0xff] %v496
        %v499 = vmul.f32 %v430, %v490
        %v500 = vmul.f32 %v431, %v490
        %v501 = vadd.f32 %v499, %v492
        %v502 = vadd.f32 %v500, %v492
        %s503 = scalar_lea.vmem %s241, 16
        %504 = vst [vmem:[%s503] sm:$0xff] %v501
        %505 = vst [vmem:[%s503 + $0x8] sm:$0xff] %v502
        %v506 = vmul.f32 %v452, %v490
        %v507 = vmul.f32 %v453, %v490
        %v508 = vadd.f32 %v506, %v492
        %v509 = vadd.f32 %v507, %v492
        %s510 = scalar_lea.vmem %s241, 32
        %511 = vst [vmem:[%s510] sm:$0xff] %v508
        %512 = vst [vmem:[%s510 + $0x8] sm:$0xff] %v509
        %v513 = vmul.f32 %v456, %v490
        %v514 = vmul.f32 %v457, %v490
        %v515 = vadd.f32 %v513, %v492
        %v516 = vadd.f32 %v514, %v492
        %s517 = scalar_lea.vmem %s241, 48
        %518 = vst [vmem:[%s517] sm:$0xff] %v515
        %519 = vst [vmem:[%s517 + $0x8] sm:$0xff] %v516
      $region40: #{upsampling_add.1} parent=31 // pred_fallthru
        _
      %p520 = scmp.lt.s32.totalorder %s19, 1
      %s521 = scalar_select %p520, %s19, 1
      %p522 = scmp.lt.s32.totalorder %s20, 0
      %s523 = scalar_select %p522, %s20, 0
      %s524 = smul.addr %s523, 2
      %s525 = smul.addr %s521, 8
      %s526 = sadd.s32 %s524, %s525
      %s527 = smul.addr %s526, 8
      %s528 = scalar_lea.vmem %s3, %s527
      // Predicated region
      $region41: #{upsampling_add.1} parent=31 // pred_check
        %p529 = pneg %p130
      $region42: #{upsampling_add.1} parent=31 // pred_check_branch
        %531 = sbr.rel (%p529) target = $region44
      $region43: #{upsampling_add.1} parent=31 // pred_region
        _
      $region44: #{upsampling_add.1} parent=31 // pred_fallthru
        _
    $region32: #{upsampling_add.1} parent=5 // pred_fallthru
      _
    %p532 = scmp.le.s32.totalorder 2, %s9
    // Predicated region
    $region45: #{upsampling_add.1} parent=5 // pred_check
      %p533 = pneg %p532
    $region46: #{upsampling_add.1} parent=5 // pred_check_branch
      %535 = sbr.rel (%p533) target = $region48
    $region47: #{upsampling_add.1} parent=5 // pred_region
      %s536 = ssub.s32 %s9, 2
      // Predicated region
      $region49: #{upsampling_add.1} parent=47 // pred_check
        %p537 = pneg %p136
      $region50: #{upsampling_add.1} parent=47 // pred_check_branch
        %539 = sbr.rel (%p537) target = $region52
      $region51: #{upsampling_add.1} parent=47 // pred_region
        %p540 = scmp.lt.s32.totalorder %s22, 1
        %s541 = scalar_select %p540, %s22, 1
        %p542 = scmp.lt.s32.totalorder %s23, 0
        %s543 = scalar_select %p542, %s23, 0
        %s544 = smul.addr %s543, 2
        %s545 = smul.addr %s541, 8
        %s546 = sadd.s32 %s544, %s545
        %s547 = smul.addr %s546, 8
        %s548 = scalar_lea.vmem %s3, %s547
      $region52: #{upsampling_add.1} parent=47 // pred_fallthru
        _
    $region48: #{upsampling_add.1} parent=5 // pred_fallthru
      _
  $region6: #{upsampling_add.1} parent=0 // loop_footer
    %s13 = sadd.s32 1, %s9
  $region7: #{upsampling_add.1} parent=0 // loop_footer_branch
    %8 = sbr.rel target = $region3
  $region8: #{upsampling_add.1} parent=0 // loop_exit
    _

</llo_original>
